<compile_context>
chip_gen: v7x
topology: tpu7x:2x2x1
jax: 0.10.0
libtpu: 0.0.40
codegen_flags: <defaults>
</compile_context>

<pallas_src>
import functools

import jax
import jax.numpy as jnp
from jax import lax
from jax.experimental import pallas as pl
from jax.experimental.pallas import tpu as pltpu

NEG_SLOPE = 0.01        # LeakyReLU(0.01)
LANE = 128              # lane tile
BF16_SUBLANE = 16       # sublane tile for bf16


def _leaky_relu(x):
    return jnp.where(x > 0, x, NEG_SLOPE * x)


def _zero_margins(buf_ref, *, B, HW, margin):
    """Zero the left/right lane margins of every image slot (tiny, aligned stores)."""
    cpad = buf_ref.shape[0]
    span = HW + 2 * margin
    zeros_m = jnp.zeros((cpad, margin), buf_ref.dtype)
    for b in range(B):
        buf_ref[:, b * span:b * span + margin] = zeros_m
        buf_ref[:, b * span + margin + HW:(b + 1) * span] = zeros_m


def _stack_taps(src_ref, patch_ref, m_left, m_right, *, B, Cpad, H, W, margin):
    """im2col: stack the 9 shifted taps of each image into patch_ref (9*Cpad, B*H*W).

    src_ref : (Cpad, B*(H*W + 2*margin)) bf16 flat-spatial activations; image b occupies
              lanes [b*span + margin, b*span + margin + H*W); margins and pad rows hold
              zeros, so taps whose row falls outside the image read zeros.
    m_left  : (1, H*W) zeros where w == 0     (cancels row-wrap of the dw=-1 shift)
    m_right : (1, H*W) zeros where w == W - 1 (cancels row-wrap of the dw=+1 shift)
    """
    HW = H * W
    span = HW + 2 * margin
    for dh in range(3):
        for dw in range(3):
            t = dh * 3 + dw
            for b in range(B):
                start = b * span + margin + (dh - 1) * W + (dw - 1)   # static flat shift
                piece = src_ref[:, start:start + HW]                  # (Cpad, HW)
                if dw == 0:
                    piece = piece * m_left                            # VPU, lane-dense
                elif dw == 2:
                    piece = piece * m_right
                # Tile-aligned, unmasked store: t*Cpad is a multiple of the bf16 sublane
                # tile and b*HW is a multiple of 128 lanes.
                patch_ref[t * Cpad:(t + 1) * Cpad, b * HW:(b + 1) * HW] = piece


def resblock_kernel(x_ref, mask_ref, w1_ref, w2_ref, o_ref,
                    xbuf, mbuf, patch, *, B, C, Cpad, H, W, margin):
    """B batch images per grid step.

    x_ref   : (B, C, H*W)  f32   flat NCHW input block (kept f32 for the residual)
    mask_ref: (2, H*W)     bf16  column masks (left, right)
    w1_ref  : (C, 9*Cpad)  bf16  conv1 weights, im2col layout (pad columns are zero)
    w2_ref  : (C, 9*Cpad)  bf16  conv2 weights, im2col layout
    o_ref   : (B, C, H*W)  f32   flat NCHW output block
    xbuf    : (Cpad, B*(H*W+2*margin)) bf16  staged input, zero margins + zero pad rows
    mbuf    : (Cpad, B*(H*W+2*margin)) bf16  conv1 activation, same layout
    patch   : (9*Cpad, B*H*W)          bf16  im2col patch matrix (shared by both convs)
    """
    HW = H * W
    span = HW + 2 * margin

    # Re-zero only the tiny margins each step; interiors (incl. pad rows) are fully
    # rewritten below -> each grid iteration is independent ("parallel"-safe).
    _zero_margins(xbuf, B=B, HW=HW, margin=margin)
    _zero_margins(mbuf, B=B, HW=HW, margin=margin)

    m_left = mask_ref[0:1, :]     # (1, HW)
    m_right = mask_ref[1:2, :]    # (1, HW)

    zpad = jnp.zeros((Cpad - C, HW), xbuf.dtype) if Cpad > C else None

    def _store_interior(buf_ref, b, rows_bf16):
        """Full-Cpad-row (unmasked, tile-aligned) store of one image interior."""
        if zpad is not None:
            rows_bf16 = jnp.concatenate([rows_bf16, zpad], axis=0)
        buf_ref[:, b * span + margin:b * span + margin + HW] = rows_bf16

    # Stage the f32 input as bf16 into the margined buffer (conv operands are bf16;
    # the residual below still uses the original f32 x_ref).
    for b in range(B):
        _store_interior(xbuf, b, x_ref[b].astype(xbuf.dtype))

    # ---- conv1: one bf16 matmul, K = 9*Cpad, N = B*H*W, f32 accumulation ------------
    _stack_taps(xbuf, patch, m_left, m_right, B=B, Cpad=Cpad, H=H, W=W, margin=margin)
    acc1 = jnp.dot(w1_ref[...], patch[...], preferred_element_type=jnp.float32)
    a1 = _leaky_relu(acc1)                                            # f32, (C, B*HW)
    for b in range(B):
        _store_interior(mbuf, b, a1[:, b * HW:(b + 1) * HW].astype(mbuf.dtype))

    # ---- conv2: one bf16 matmul ------------------------------------------------------
    _stack_taps(mbuf, patch, m_left, m_right, B=B, Cpad=Cpad, H=H, W=W, margin=margin)
    acc2 = jnp.dot(w2_ref[...], patch[...], preferred_element_type=jnp.float32)

    # ---- f32 residual add + LeakyReLU, lane-dense (C, H*W) stores --------------------
    for b in range(B):
        out_b = _leaky_relu(acc2[:, b * HW:(b + 1) * HW] + x_ref[b].astype(jnp.float32))
        o_ref[b] = out_b.astype(o_ref.dtype)


def _im2col_weights(w, Cpad):
    """(Cout, Cin, 3, 3) OIHW -> (Cout, 9*Cpad) bf16, column k = (dh*3+dw)*Cpad + ci."""
    Cout, Cin, KH, KW = w.shape
    w_perm = jnp.transpose(w, (0, 2, 3, 1))                           # (Cout, KH, KW, Cin)
    w_perm = jnp.pad(w_perm, ((0, 0), (0, 0), (0, 0), (0, Cpad - Cin)))
    return w_perm.reshape(Cout, KH * KW * Cpad).astype(jnp.bfloat16)


def _pick_images_per_step(N):
    """Largest divisor of N keeping >= 2 'parallel' grid steps (v7x has 2 TensorCores)."""
    if N <= 2:
        return 1
    for b in range(N // 2, 0, -1):
        if N % b == 0:
            return b
    return 1


@functools.partial(jax.jit, static_argnames=("images_per_step",))
def resblock_forward(x_nchw, w1, w2, *, images_per_step=None):
    """x_nchw: (N, C, H, W) f32; w1, w2: (C, C, 3, 3) OIHW, bias-free (downsample=None)."""
    N, Cin, H, W = x_nchw.shape
    Cout = w1.shape[0]
    assert Cin == Cout, "downsample=None path requires in_channels == out_channels"
    HW = H * W
    assert HW % LANE == 0, "H*W must be a multiple of 128 lanes"

    B = images_per_step if images_per_step is not None else _pick_images_per_step(N)
    assert N % B == 0, "images_per_step must divide the batch"

    # Channel pad to the bf16 sublane tile -> unmasked, aligned patch stores/loads.
    Cpad = ((Cin + BF16_SUBLANE - 1) // BF16_SUBLANE) * BF16_SUBLANE
    # Margin must cover one row +/- one column of flat shift; lane-tile aligned.
    margin = ((W + 1 + LANE - 1) // LANE) * LANE
    span = HW + 2 * margin

    # Free reshape only — no transpose, no pad, no extra HBM round trip.
    x_flat = x_nchw.reshape(N, Cin, HW)
    w1_mat = _im2col_weights(w1, Cpad)
    w2_mat = _im2col_weights(w2, Cpad)

    # Column masks cancelling the row-wrap of the +-1 column shifts.
    col = jnp.arange(HW, dtype=jnp.int32) % W
    masks = jnp.stack([col != 0, col != (W - 1)]).astype(jnp.bfloat16)   # (2, HW)

    kernel = functools.partial(resblock_kernel, B=B, C=Cin, Cpad=Cpad,
                               H=H, W=W, margin=margin)

    # Explicit VMEM budget: bf16 scratch + double-buffered f32 in/out blocks + consts.
    scratch_bytes = (2 * Cpad * B * span + 9 * Cpad * B * HW) * 2
    io_bytes = 2 * 2 * (B * Cin * HW) * x_nchw.dtype.itemsize
    const_bytes = 2 * (2 * HW + 2 * Cout * 9 * Cpad) * 2
    vmem_limit = int(min(64 * 1024 * 1024,
                         max(16 * 1024 * 1024,
                             2 * (scratch_bytes + io_bytes + const_bytes))))

    out_flat = pl.pallas_call(
        kernel,
        out_shape=jax.ShapeDtypeStruct((N, Cout, HW), x_nchw.dtype),
        grid_spec=pltpu.PrefetchScalarGridSpec(
            num_scalar_prefetch=0,
            grid=(N // B,),
            in_specs=[
                pl.BlockSpec((B, Cin, HW), lambda n: (n, 0, 0)),
                pl.BlockSpec((2, HW), lambda n: (0, 0)),                 # resident masks
                pl.BlockSpec((Cout, 9 * Cpad), lambda n: (0, 0)),        # resident weights
                pl.BlockSpec((Cout, 9 * Cpad), lambda n: (0, 0)),
            ],
            out_specs=pl.BlockSpec((B, Cout, HW), lambda n: (n, 0, 0)),
            scratch_shapes=[
                pltpu.VMEM((Cpad, B * span), jnp.bfloat16),     # xbuf
                pltpu.VMEM((Cpad, B * span), jnp.bfloat16),     # mbuf
                pltpu.VMEM((9 * Cpad, B * HW), jnp.bfloat16),   # patch (im2col)
            ],
        ),
        compiler_params=pltpu.CompilerParams(
            dimension_semantics=("parallel",),
            vmem_limit_bytes=vmem_limit),
    )(x_flat, masks, w1_mat, w2_mat)

    return out_flat.reshape(N, Cout, H, W)   # free reshape back to NCHW


# ------------------------------- references ------------------------------------------
def _conv3x3(x, w, *, preferred=None):
    dn = lax.conv_dimension_numbers(x.shape, w.shape, ("NCHW", "OIHW", "NCHW"))
    return lax.conv_general_dilated(x, w, (1, 1), ((1, 1), (1, 1)),
                                    dimension_numbers=dn,
                                    preferred_element_type=preferred)


def _reference_f32(x, w1, w2):
    """Pure-JAX f32 reference (mirrors PyTorch ResBlock.forward with downsample=None)."""
    c1 = _conv3x3(x, w1)
    a1 = jnp.where(c1 > 0, c1, NEG_SLOPE * c1)
    c2 = _conv3x3(a1, w2)
    s = c2 + x
    return jnp.where(s > 0, s, NEG_SLOPE * s)


def _reference_bf16_matmul(x, w1, w2):
    """Mirrors the kernel's precision policy: bf16 conv operands, f32 accumulation,
    bf16 intermediate activation, f32 residual add."""
    bf = jnp.bfloat16
    c1 = _conv3x3(x.astype(bf), w1.astype(bf), preferred=jnp.float32)
    a1 = jnp.where(c1 > 0, c1, NEG_SLOPE * c1).astype(bf)
    c2 = _conv3x3(a1, w2.astype(bf), preferred=jnp.float32)
    s = c2 + x
    return jnp.where(s > 0, s, NEG_SLOPE * s)


if __name__ == "__main__":
    key = jax.random.PRNGKey(0)
    k_x, k_w1, k_w2, k_x2 = jax.random.split(key, 4)

    N, C, H, W = 2, 4, 16, 16   # in_channels = out_channels = 4
    x = jax.random.normal(k_x, (N, C, H, W), dtype=jnp.float32)

    # Deterministic "Kaiming-ish" init for the two conv weights (OIHW, bias=False).
    fan_in = C * 3 * 3
    w1 = jax.random.normal(k_w1, (C, C, 3, 3), dtype=jnp.float32) * (2.0 / fan_in) ** 0.5
    w2 = jax.random.normal(k_w2, (C, C, 3, 3), dtype=jnp.float32) * (2.0 / fan_in) ** 0.5

    out = jax.block_until_ready(resblock_forward(x, w1, w2))
    assert out.shape == (N, C, H, W)

    ref_bf16 = jax.block_until_ready(_reference_bf16_matmul(x, w1, w2))
    ref_f32 = jax.block_until_ready(_reference_f32(x, w1, w2))
    assert jnp.max(jnp.abs(out - ref_bf16)) < 1e-2, "mismatch vs bf16-matmul reference"
    assert jnp.max(jnp.abs(out - ref_f32)) < 1e-1, "mismatch vs f32 reference (sanity)"

    # Exercise the multi-image-per-step path (N=4 -> B=2, still 2 'parallel' grid steps).
    x4 = jax.random.normal(k_x2, (4, C, H, W), dtype=jnp.float32)
    out4 = jax.block_until_ready(resblock_forward(x4, w1, w2))
    ref4 = jax.block_until_ready(_reference_bf16_matmul(x4, w1, w2))
    assert jnp.max(jnp.abs(out4 - ref4)) < 1e-2, "mismatch (images_per_step=2 path)"

    print("KERNEL_OK")
</pallas_src>

<mosaic_0001>
module attributes {stable_mosaic.version = 11 : i64} {
  func.func @resblock_kernel(%arg0: i32, %arg1: memref<1x4x256xf32, #tpu.memory_space<vmem>>, %arg2: memref<2x256xbf16, #tpu.memory_space<vmem>>, %arg3: memref<4x144xbf16, #tpu.memory_space<vmem>>, %arg4: memref<4x144xbf16, #tpu.memory_space<vmem>>, %arg5: memref<1x4x256xf32, #tpu.memory_space<vmem>>, %arg6: memref<16x512xbf16, #tpu.memory_space<vmem>>, %arg7: memref<16x512xbf16, #tpu.memory_space<vmem>>, %arg8: memref<144x256xbf16, #tpu.memory_space<vmem>>) attributes {dimension_semantics = [#tpu.dimension_semantics<parallel>], iteration_bounds = array<i64: 2>, scalar_prefetch = 0 : i64, scratch_operands = 3 : i64, tpu.core_type = #tpu.core_type<tc>, window_params = [{transform_indices = @transform_0, window_bounds = array<i64: 1, 4, 256>}, {pipeline_mode = #tpu.pipeline_mode<synchronous>, transform_indices = @transform_1, window_bounds = array<i64: 2, 256>}, {pipeline_mode = #tpu.pipeline_mode<synchronous>, transform_indices = @transform_2, window_bounds = array<i64: 4, 144>}, {pipeline_mode = #tpu.pipeline_mode<synchronous>, transform_indices = @transform_3, window_bounds = array<i64: 4, 144>}, {transform_indices = @transform_4, window_bounds = array<i64: 1, 4, 256>}]} {
    %cst = arith.constant 0.000000e+00 : bf16
    %0 = vector.broadcast %cst : bf16 to vector<16x128xbf16>
    %c0 = arith.constant 0 : index
    %c0_0 = arith.constant 0 : index
    %1 = vector.load %arg6[%c0, %c0_0] : memref<16x512xbf16, #tpu.memory_space<vmem>>, vector<16x128xbf16>
    tpu.vector_store %arg6[%c0, %c0_0], %0 {strides = array<i32>} : memref<16x512xbf16, #tpu.memory_space<vmem>>, vector<16x128xbf16>,
    %c0_1 = arith.constant 0 : index
    %c384 = arith.constant 384 : index
    %2 = vector.load %arg6[%c0_1, %c384] : memref<16x512xbf16, #tpu.memory_space<vmem>>, vector<16x128xbf16>
    tpu.vector_store %arg6[%c0_1, %c384], %0 {strides = array<i32>} : memref<16x512xbf16, #tpu.memory_space<vmem>>, vector<16x128xbf16>,
    %cst_2 = arith.constant 0.000000e+00 : bf16
    %3 = vector.broadcast %cst_2 : bf16 to vector<16x128xbf16>
    %c0_3 = arith.constant 0 : index
    %c0_4 = arith.constant 0 : index
    %4 = vector.load %arg7[%c0_3, %c0_4] : memref<16x512xbf16, #tpu.memory_space<vmem>>, vector<16x128xbf16>
    tpu.vector_store %arg7[%c0_3, %c0_4], %3 {strides = array<i32>} : memref<16x512xbf16, #tpu.memory_space<vmem>>, vector<16x128xbf16>,
    %c0_5 = arith.constant 0 : index
    %c384_6 = arith.constant 384 : index
    %5 = vector.load %arg7[%c0_5, %c384_6] : memref<16x512xbf16, #tpu.memory_space<vmem>>, vector<16x128xbf16>
    tpu.vector_store %arg7[%c0_5, %c384_6], %3 {strides = array<i32>} : memref<16x512xbf16, #tpu.memory_space<vmem>>, vector<16x128xbf16>,
    %c0_7 = arith.constant 0 : index
    %c0_8 = arith.constant 0 : index
    %6 = vector.load %arg2[%c0_7, %c0_8] : memref<2x256xbf16, #tpu.memory_space<vmem>>, vector<1x256xbf16>
    %c1 = arith.constant 1 : index
    %c0_9 = arith.constant 0 : index
    %7 = vector.load %arg2[%c1, %c0_9] : memref<2x256xbf16, #tpu.memory_space<vmem>>, vector<1x256xbf16>
    %cst_10 = arith.constant 0.000000e+00 : bf16
    %8 = vector.broadcast %cst_10 : bf16 to vector<12x256xbf16>
    %c0_11 = arith.constant 0 : index
    %c0_12 = arith.constant 0 : index
    %c0_13 = arith.constant 0 : index
    %9 = vector.load %arg1[%c0_11, %c0_12, %c0_13] : memref<1x4x256xf32, #tpu.memory_space<vmem>>, vector<1x4x256xf32>
    %10 = vector.shape_cast %9 : vector<1x4x256xf32> to vector<4x256xf32>
    %11 = arith.truncf %10 : vector<4x256xf32> to vector<4x256xbf16>
    %12 = tpu.concatenate %11, %8 in 0 : vector<4x256xbf16>, vector<12x256xbf16> -> vector<16x256xbf16>
    %c0_14 = arith.constant 0 : index
    %c128 = arith.constant 128 : index
    %13 = vector.load %arg6[%c0_14, %c128] : memref<16x512xbf16, #tpu.memory_space<vmem>>, vector<16x256xbf16>
    tpu.vector_store %arg6[%c0_14, %c128], %12 {strides = array<i32>} : memref<16x512xbf16, #tpu.memory_space<vmem>>, vector<16x256xbf16>,
    %c0_15 = arith.constant 0 : index
    %c111 = arith.constant 111 : index
    %14 = vector.load %arg6[%c0_15, %c111] : memref<16x512xbf16, #tpu.memory_space<vmem>>, vector<16x256xbf16>
    %15 = vector.broadcast %6 : vector<1x256xbf16> to vector<16x256xbf16>
    %16 = arith.mulf %14, %15 : vector<16x256xbf16>
    %c0_16 = arith.constant 0 : index
    %c0_17 = arith.constant 0 : index
    %17 = vector.load %arg8[%c0_16, %c0_17] : memref<144x256xbf16, #tpu.memory_space<vmem>>, vector<16x256xbf16>
    tpu.vector_store %arg8[%c0_16, %c0_17], %16 {strides = array<i32>} : memref<144x256xbf16, #tpu.memory_space<vmem>>, vector<16x256xbf16>,
    %c0_18 = arith.constant 0 : index
    %c112 = arith.constant 112 : index
    %18 = vector.load %arg6[%c0_18, %c112] : memref<16x512xbf16, #tpu.memory_space<vmem>>, vector<16x256xbf16>
    %c16 = arith.constant 16 : index
    %c0_19 = arith.constant 0 : index
    %19 = vector.load %arg8[%c16, %c0_19] : memref<144x256xbf16, #tpu.memory_space<vmem>>, vector<16x256xbf16>
    tpu.vector_store %arg8[%c16, %c0_19], %18 {strides = array<i32>} : memref<144x256xbf16, #tpu.memory_space<vmem>>, vector<16x256xbf16>,
    %c0_20 = arith.constant 0 : index
    %c113 = arith.constant 113 : index
    %20 = vector.load %arg6[%c0_20, %c113] : memref<16x512xbf16, #tpu.memory_space<vmem>>, vector<16x256xbf16>
    %21 = vector.broadcast %7 : vector<1x256xbf16> to vector<16x256xbf16>
    %22 = arith.mulf %20, %21 : vector<16x256xbf16>
    %c32 = arith.constant 32 : index
    %c0_21 = arith.constant 0 : index
    %23 = vector.load %arg8[%c32, %c0_21] : memref<144x256xbf16, #tpu.memory_space<vmem>>, vector<16x256xbf16>
    tpu.vector_store %arg8[%c32, %c0_21], %22 {strides = array<i32>} : memref<144x256xbf16, #tpu.memory_space<vmem>>, vector<16x256xbf16>,
    %c0_22 = arith.constant 0 : index
    %c127 = arith.constant 127 : index
    %24 = vector.load %arg6[%c0_22, %c127] : memref<16x512xbf16, #tpu.memory_space<vmem>>, vector<16x256xbf16>
    %25 = vector.broadcast %6 : vector<1x256xbf16> to vector<16x256xbf16>
    %26 = arith.mulf %24, %25 : vector<16x256xbf16>
    %c48 = arith.constant 48 : index
    %c0_23 = arith.constant 0 : index
    %27 = vector.load %arg8[%c48, %c0_23] : memref<144x256xbf16, #tpu.memory_space<vmem>>, vector<16x256xbf16>
    tpu.vector_store %arg8[%c48, %c0_23], %26 {strides = array<i32>} : memref<144x256xbf16, #tpu.memory_space<vmem>>, vector<16x256xbf16>,
    %c0_24 = arith.constant 0 : index
    %c128_25 = arith.constant 128 : index
    %28 = vector.load %arg6[%c0_24, %c128_25] : memref<16x512xbf16, #tpu.memory_space<vmem>>, vector<16x256xbf16>
    %c64 = arith.constant 64 : index
    %c0_26 = arith.constant 0 : index
    %29 = vector.load %arg8[%c64, %c0_26] : memref<144x256xbf16, #tpu.memory_space<vmem>>, vector<16x256xbf16>
    tpu.vector_store %arg8[%c64, %c0_26], %28 {strides = array<i32>} : memref<144x256xbf16, #tpu.memory_space<vmem>>, vector<16x256xbf16>,
    %c0_27 = arith.constant 0 : index
    %c129 = arith.constant 129 : index
    %30 = vector.load %arg6[%c0_27, %c129] : memref<16x512xbf16, #tpu.memory_space<vmem>>, vector<16x256xbf16>
    %31 = vector.broadcast %7 : vector<1x256xbf16> to vector<16x256xbf16>
    %32 = arith.mulf %30, %31 : vector<16x256xbf16>
    %c80 = arith.constant 80 : index
    %c0_28 = arith.constant 0 : index
    %33 = vector.load %arg8[%c80, %c0_28] : memref<144x256xbf16, #tpu.memory_space<vmem>>, vector<16x256xbf16>
    tpu.vector_store %arg8[%c80, %c0_28], %32 {strides = array<i32>} : memref<144x256xbf16, #tpu.memory_space<vmem>>, vector<16x256xbf16>,
    %c0_29 = arith.constant 0 : index
    %c143 = arith.constant 143 : index
    %34 = vector.load %arg6[%c0_29, %c143] : memref<16x512xbf16, #tpu.memory_space<vmem>>, vector<16x256xbf16>
    %35 = vector.broadcast %6 : vector<1x256xbf16> to vector<16x256xbf16>
    %36 = arith.mulf %34, %35 : vector<16x256xbf16>
    %c96 = arith.constant 96 : index
    %c0_30 = arith.constant 0 : index
    %37 = vector.load %arg8[%c96, %c0_30] : memref<144x256xbf16, #tpu.memory_space<vmem>>, vector<16x256xbf16>
    tpu.vector_store %arg8[%c96, %c0_30], %36 {strides = array<i32>} : memref<144x256xbf16, #tpu.memory_space<vmem>>, vector<16x256xbf16>,
    %c0_31 = arith.constant 0 : index
    %c144 = arith.constant 144 : index
    %38 = vector.load %arg6[%c0_31, %c144] : memref<16x512xbf16, #tpu.memory_space<vmem>>, vector<16x256xbf16>
    %c112_32 = arith.constant 112 : index
    %c0_33 = arith.constant 0 : index
    %39 = vector.load %arg8[%c112_32, %c0_33] : memref<144x256xbf16, #tpu.memory_space<vmem>>, vector<16x256xbf16>
    tpu.vector_store %arg8[%c112_32, %c0_33], %38 {strides = array<i32>} : memref<144x256xbf16, #tpu.memory_space<vmem>>, vector<16x256xbf16>,
    %c0_34 = arith.constant 0 : index
    %c145 = arith.constant 145 : index
    %40 = vector.load %arg6[%c0_34, %c145] : memref<16x512xbf16, #tpu.memory_space<vmem>>, vector<16x256xbf16>
    %41 = vector.broadcast %7 : vector<1x256xbf16> to vector<16x256xbf16>
    %42 = arith.mulf %40, %41 : vector<16x256xbf16>
    %c128_35 = arith.constant 128 : index
    %c0_36 = arith.constant 0 : index
    %43 = vector.load %arg8[%c128_35, %c0_36] : memref<144x256xbf16, #tpu.memory_space<vmem>>, vector<16x256xbf16>
    tpu.vector_store %arg8[%c128_35, %c0_36], %42 {strides = array<i32>} : memref<144x256xbf16, #tpu.memory_space<vmem>>, vector<16x256xbf16>,
    %c0_37 = arith.constant 0 : index
    %c0_38 = arith.constant 0 : index
    %44 = vector.load %arg3[%c0_37, %c0_38] : memref<4x144xbf16, #tpu.memory_space<vmem>>, vector<4x144xbf16>
    %c0_39 = arith.constant 0 : index
    %c0_40 = arith.constant 0 : index
    %45 = vector.load %arg8[%c0_39, %c0_40] : memref<144x256xbf16, #tpu.memory_space<vmem>>, vector<144x256xbf16>
    %cst_41 = arith.constant dense<0.000000e+00> : vector<4x256xf32>
    %46 = tpu.matmul %44, %45, %cst_41 {dimension_numbers = #tpu.dot_dimension_numbers<[1], [0], [0], [1], [0, 0, 1, 1], [], []>} : vector<4x144xbf16>, vector<144x256xbf16>, vector<4x256xf32> -> vector<4x256xf32>
    %cst_42 = arith.constant 0.000000e+00 : f32
    %47 = vector.broadcast %cst_42 : f32 to vector<4x256xf32>
    %48 = arith.cmpf ogt, %46, %47 : vector<4x256xf32>
    %cst_43 = arith.constant 0.00999999977 : f32
    %49 = vector.broadcast %cst_43 : f32 to vector<4x256xf32>
    %50 = arith.mulf %49, %46 : vector<4x256xf32>
    %51 = arith.select %48, %46, %50 : vector<4x256xi1>, vector<4x256xf32>
    %52 = arith.truncf %51 : vector<4x256xf32> to vector<4x256xbf16>
    %53 = tpu.concatenate %52, %8 in 0 : vector<4x256xbf16>, vector<12x256xbf16> -> vector<16x256xbf16>
    %c0_44 = arith.constant 0 : index
    %c128_45 = arith.constant 128 : index
    %54 = vector.load %arg7[%c0_44, %c128_45] : memref<16x512xbf16, #tpu.memory_space<vmem>>, vector<16x256xbf16>
    tpu.vector_store %arg7[%c0_44, %c128_45], %53 {strides = array<i32>} : memref<16x512xbf16, #tpu.memory_space<vmem>>, vector<16x256xbf16>,
    %c0_46 = arith.constant 0 : index
    %c111_47 = arith.constant 111 : index
    %55 = vector.load %arg7[%c0_46, %c111_47] : memref<16x512xbf16, #tpu.memory_space<vmem>>, vector<16x256xbf16>
    %56 = vector.broadcast %6 : vector<1x256xbf16> to vector<16x256xbf16>
    %57 = arith.mulf %55, %56 : vector<16x256xbf16>
    %c0_48 = arith.constant 0 : index
    %c0_49 = arith.constant 0 : index
    %58 = vector.load %arg8[%c0_48, %c0_49] : memref<144x256xbf16, #tpu.memory_space<vmem>>, vector<16x256xbf16>
    tpu.vector_store %arg8[%c0_48, %c0_49], %57 {strides = array<i32>} : memref<144x256xbf16, #tpu.memory_space<vmem>>, vector<16x256xbf16>,
    %c0_50 = arith.constant 0 : index
    %c112_51 = arith.constant 112 : index
    %59 = vector.load %arg7[%c0_50, %c112_51] : memref<16x512xbf16, #tpu.memory_space<vmem>>, vector<16x256xbf16>
    %c16_52 = arith.constant 16 : index
    %c0_53 = arith.constant 0 : index
    %60 = vector.load %arg8[%c16_52, %c0_53] : memref<144x256xbf16, #tpu.memory_space<vmem>>, vector<16x256xbf16>
    tpu.vector_store %arg8[%c16_52, %c0_53], %59 {strides = array<i32>} : memref<144x256xbf16, #tpu.memory_space<vmem>>, vector<16x256xbf16>,
    %c0_54 = arith.constant 0 : index
    %c113_55 = arith.constant 113 : index
    %61 = vector.load %arg7[%c0_54, %c113_55] : memref<16x512xbf16, #tpu.memory_space<vmem>>, vector<16x256xbf16>
    %62 = vector.broadcast %7 : vector<1x256xbf16> to vector<16x256xbf16>
    %63 = arith.mulf %61, %62 : vector<16x256xbf16>
    %c32_56 = arith.constant 32 : index
    %c0_57 = arith.constant 0 : index
    %64 = vector.load %arg8[%c32_56, %c0_57] : memref<144x256xbf16, #tpu.memory_space<vmem>>, vector<16x256xbf16>
    tpu.vector_store %arg8[%c32_56, %c0_57], %63 {strides = array<i32>} : memref<144x256xbf16, #tpu.memory_space<vmem>>, vector<16x256xbf16>,
    %c0_58 = arith.constant 0 : index
    %c127_59 = arith.constant 127 : index
    %65 = vector.load %arg7[%c0_58, %c127_59] : memref<16x512xbf16, #tpu.memory_space<vmem>>, vector<16x256xbf16>
    %66 = vector.broadcast %6 : vector<1x256xbf16> to vector<16x256xbf16>
    %67 = arith.mulf %65, %66 : vector<16x256xbf16>
    %c48_60 = arith.constant 48 : index
    %c0_61 = arith.constant 0 : index
    %68 = vector.load %arg8[%c48_60, %c0_61] : memref<144x256xbf16, #tpu.memory_space<vmem>>, vector<16x256xbf16>
    tpu.vector_store %arg8[%c48_60, %c0_61], %67 {strides = array<i32>} : memref<144x256xbf16, #tpu.memory_space<vmem>>, vector<16x256xbf16>,
    %c0_62 = arith.constant 0 : index
    %c128_63 = arith.constant 128 : index
    %69 = vector.load %arg7[%c0_62, %c128_63] : memref<16x512xbf16, #tpu.memory_space<vmem>>, vector<16x256xbf16>
    %c64_64 = arith.constant 64 : index
    %c0_65 = arith.constant 0 : index
    %70 = vector.load %arg8[%c64_64, %c0_65] : memref<144x256xbf16, #tpu.memory_space<vmem>>, vector<16x256xbf16>
    tpu.vector_store %arg8[%c64_64, %c0_65], %69 {strides = array<i32>} : memref<144x256xbf16, #tpu.memory_space<vmem>>, vector<16x256xbf16>,
    %c0_66 = arith.constant 0 : index
    %c129_67 = arith.constant 129 : index
    %71 = vector.load %arg7[%c0_66, %c129_67] : memref<16x512xbf16, #tpu.memory_space<vmem>>, vector<16x256xbf16>
    %72 = vector.broadcast %7 : vector<1x256xbf16> to vector<16x256xbf16>
    %73 = arith.mulf %71, %72 : vector<16x256xbf16>
    %c80_68 = arith.constant 80 : index
    %c0_69 = arith.constant 0 : index
    %74 = vector.load %arg8[%c80_68, %c0_69] : memref<144x256xbf16, #tpu.memory_space<vmem>>, vector<16x256xbf16>
    tpu.vector_store %arg8[%c80_68, %c0_69], %73 {strides = array<i32>} : memref<144x256xbf16, #tpu.memory_space<vmem>>, vector<16x256xbf16>,
    %c0_70 = arith.constant 0 : index
    %c143_71 = arith.constant 143 : index
    %75 = vector.load %arg7[%c0_70, %c143_71] : memref<16x512xbf16, #tpu.memory_space<vmem>>, vector<16x256xbf16>
    %76 = vector.broadcast %6 : vector<1x256xbf16> to vector<16x256xbf16>
    %77 = arith.mulf %75, %76 : vector<16x256xbf16>
    %c96_72 = arith.constant 96 : index
    %c0_73 = arith.constant 0 : index
    %78 = vector.load %arg8[%c96_72, %c0_73] : memref<144x256xbf16, #tpu.memory_space<vmem>>, vector<16x256xbf16>
    tpu.vector_store %arg8[%c96_72, %c0_73], %77 {strides = array<i32>} : memref<144x256xbf16, #tpu.memory_space<vmem>>, vector<16x256xbf16>,
    %c0_74 = arith.constant 0 : index
    %c144_75 = arith.constant 144 : index
    %79 = vector.load %arg7[%c0_74, %c144_75] : memref<16x512xbf16, #tpu.memory_space<vmem>>, vector<16x256xbf16>
    %c112_76 = arith.constant 112 : index
    %c0_77 = arith.constant 0 : index
    %80 = vector.load %arg8[%c112_76, %c0_77] : memref<144x256xbf16, #tpu.memory_space<vmem>>, vector<16x256xbf16>
    tpu.vector_store %arg8[%c112_76, %c0_77], %79 {strides = array<i32>} : memref<144x256xbf16, #tpu.memory_space<vmem>>, vector<16x256xbf16>,
    %c0_78 = arith.constant 0 : index
    %c145_79 = arith.constant 145 : index
    %81 = vector.load %arg7[%c0_78, %c145_79] : memref<16x512xbf16, #tpu.memory_space<vmem>>, vector<16x256xbf16>
    %82 = vector.broadcast %7 : vector<1x256xbf16> to vector<16x256xbf16>
    %83 = arith.mulf %81, %82 : vector<16x256xbf16>
    %c128_80 = arith.constant 128 : index
    %c0_81 = arith.constant 0 : index
    %84 = vector.load %arg8[%c128_80, %c0_81] : memref<144x256xbf16, #tpu.memory_space<vmem>>, vector<16x256xbf16>
    tpu.vector_store %arg8[%c128_80, %c0_81], %83 {strides = array<i32>} : memref<144x256xbf16, #tpu.memory_space<vmem>>, vector<16x256xbf16>,
    %c0_82 = arith.constant 0 : index
    %c0_83 = arith.constant 0 : index
    %85 = vector.load %arg4[%c0_82, %c0_83] : memref<4x144xbf16, #tpu.memory_space<vmem>>, vector<4x144xbf16>
    %c0_84 = arith.constant 0 : index
    %c0_85 = arith.constant 0 : index
    %86 = vector.load %arg8[%c0_84, %c0_85] : memref<144x256xbf16, #tpu.memory_space<vmem>>, vector<144x256xbf16>
    %cst_86 = arith.constant dense<0.000000e+00> : vector<4x256xf32>
    %87 = tpu.matmul %85, %86, %cst_86 {dimension_numbers = #tpu.dot_dimension_numbers<[1], [0], [0], [1], [0, 0, 1, 1], [], []>} : vector<4x144xbf16>, vector<144x256xbf16>, vector<4x256xf32> -> vector<4x256xf32>
    %c0_87 = arith.constant 0 : index
    %c0_88 = arith.constant 0 : index
    %c0_89 = arith.constant 0 : index
    %88 = vector.load %arg1[%c0_87, %c0_88, %c0_89] : memref<1x4x256xf32, #tpu.memory_space<vmem>>, vector<1x4x256xf32>
    %89 = vector.shape_cast %88 : vector<1x4x256xf32> to vector<4x256xf32>
    %90 = arith.addf %87, %89 : vector<4x256xf32>
    %cst_90 = arith.constant 0.000000e+00 : f32
    %91 = vector.broadcast %cst_90 : f32 to vector<4x256xf32>
    %92 = arith.cmpf ogt, %90, %91 : vector<4x256xf32>
    %cst_91 = arith.constant 0.00999999977 : f32
    %93 = vector.broadcast %cst_91 : f32 to vector<4x256xf32>
    %94 = arith.mulf %93, %90 : vector<4x256xf32>
    %95 = arith.select %92, %90, %94 : vector<4x256xi1>, vector<4x256xf32>
    %c0_92 = arith.constant 0 : index
    %c0_93 = arith.constant 0 : index
    %c0_94 = arith.constant 0 : index
    %96 = vector.load %arg5[%c0_92, %c0_93, %c0_94] : memref<1x4x256xf32, #tpu.memory_space<vmem>>, vector<1x4x256xf32>
    %97 = vector.shape_cast %96 : vector<1x4x256xf32> to vector<4x256xf32>
    %98 = vector.shape_cast %95 : vector<4x256xf32> to vector<1x4x256xf32>
    tpu.vector_store %arg5[%c0_92, %c0_93, %c0_94], %98 {strides = array<i32>} : memref<1x4x256xf32, #tpu.memory_space<vmem>>, vector<1x4x256xf32>,
    return
  }
  func.func @transform_0(%arg0: i32) -> (i32, i32, i32) {
    %c0_i32 = arith.constant 0 : i32
    %c0_i32_0 = arith.constant 0 : i32
    %c0_i32_1 = arith.constant 0 : i32
    return %arg0, %c0_i32, %c0_i32_0 : i32, i32, i32
  }
  func.func @transform_1(%arg0: i32) -> (i32, i32) {
    %c0_i32 = arith.constant 0 : i32
    %c0_i32_0 = arith.constant 0 : i32
    %c0_i32_1 = arith.constant 0 : i32
    return %c0_i32, %c0_i32_0 : i32, i32
  }
  func.func @transform_2(%arg0: i32) -> (i32, i32) {
    %c0_i32 = arith.constant 0 : i32
    %c0_i32_0 = arith.constant 0 : i32
    %c0_i32_1 = arith.constant 0 : i32
    return %c0_i32, %c0_i32_0 : i32, i32
  }
  func.func @transform_3(%arg0: i32) -> (i32, i32) {
    %c0_i32 = arith.constant 0 : i32
    %c0_i32_0 = arith.constant 0 : i32
    %c0_i32_1 = arith.constant 0 : i32
    return %c0_i32, %c0_i32_0 : i32, i32
  }
  func.func @transform_4(%arg0: i32) -> (i32, i32, i32) {
    %c0_i32 = arith.constant 0 : i32
    %c0_i32_0 = arith.constant 0 : i32
    %c0_i32_1 = arith.constant 0 : i32
    return %arg0, %c0_i32, %c0_i32_0 : i32, i32, i32
  }
}

</mosaic_0001>

<llo_original>
// kernel: resblock_forward.1
$region0: #{resblock_forward.1}
  #allocation0 [shape = 'u32[]', space=smem, size = 0x4, offset = 0x4, fixed_abs, tag = 'smem constant byte address 0x4 - core index']
  #allocation1 [shape = 'u32[144,128]{1,0:T(1,128)}', space=vmem, size = 0x12000, scoped, tag = 'internal scratch']
  #allocation2 [shape = 'bf16[16,512]{1,0:T(16,128)(2,1)}', space=vmem, size = 0x4000, scoped, tag = 'scratch operand']
  #allocation3 [shape = 'bf16[16,512]{1,0:T(16,128)(2,1)}', space=vmem, size = 0x4000, scoped, tag = 'scratch operand']
  #allocation4 [shape = 'bf16[144,256]{1,0:T(16,128)(2,1)}', space=vmem, size = 0x12000, scoped, tag = 'scratch operand']
  %s0 = inlined_call_operand.vmem [shape: f32[2,4,256], index: 0, kind: input, shape index: {}]
  %s1 = inlined_call_operand.vmem [shape: bf16[2,256], index: 1, kind: input, shape index: {}]
  %s2 = inlined_call_operand.vmem [shape: bf16[4,144], index: 2, kind: input, shape index: {}]
  %s3 = inlined_call_operand.vmem [shape: bf16[4,144], index: 3, kind: input, shape index: {}]
  %s4 = inlined_call_operand.vmem [shape: f32[2,4,256], index: 4, kind: output, shape index: {}]
  %s5 = sld [smem:[#allocation0]]
  $region49: #{resblock_forward.1} parent=0
    _
  %s7 = ssub.s32 1, %s5
  %s8 = scalar_select 0, %s7, %s5
  loop: start=0, step=1, limit=4
  $region2: #{resblock_forward.1} parent=0 // loop_pre_header
    _
  $region3: #{resblock_forward.1} parent=0 // loop_header
    %s10 = sphi 0, %s14
    %p11 = scmp.ge.s32.totalorder %s10, 4
    %s20 = sphi 0, %s22
    %s23 = sphi 0, %s20
    %s24 = sphi 0, %s23
    %s40 = sphi 0, %s24
    %s44 = sphi 0, %s44
    %s46 = sphi 0, %s44
    %s47 = sphi 0, %s46
    %s61 = sphi 0, %s47
    %s65 = sphi 0, %s65
    %s67 = sphi 0, %s65
    %s68 = sphi 0, %s67
    %s82 = sphi 0, %s68
    %s86 = sphi 0, %s86
    %s88 = sphi 0, %s86
    %s89 = sphi 0, %s88
    %s103 = sphi 0, %s89
    %s109 = sphi 0, %s111
    %s112 = sphi 0, %s109
    %s113 = sphi 0, %s112
    %s129 = sphi 0, %s113
  $region4: #{resblock_forward.1} parent=0 // loop_header_branch
    %13 = sbr.rel (%p11) target = $region8
  $region5: #{resblock_forward.1} parent=0 // loop_body
    %s15 = ssub.s32 %s10, 1
    %s16 = ssub.s32 %s10, 2
    %s17 = sadd.s32 %s10, 1
    %s18 = ssub.s32 %s10, %s17
    %p19 = scmp.eq.s32.totalorder %s18, 0
    %s21 = sadd.s32 %s20, 1
    %s22 = scalar_select %p19, %s20, %s21
    %p25 = pneg %p19
    %p26 = scmp.eq.s32.totalorder %s10, 1
    %p27 = por %p25, %p26
    %p28 = scmp.ne.s32.totalorder %s20, %s23
    %p29 = scmp.eq.s32.totalorder %s10, 0
    %p30 = por %p28, %p29
    %p31 = scmp.ne.s32.totalorder %s20, %s23
    %p32 = scmp.eq.s32.totalorder %s15, 1
    %p33 = por %p31, %p32
    %p34 = scmp.ne.s32.totalorder %s23, %s24
    %p35 = scmp.eq.s32.totalorder %s15, 0
    %p36 = por %p34, %p35
    %p37 = scmp.ne.s32.totalorder %s23, %s24
    %p38 = scmp.eq.s32.totalorder %s16, 1
    %p39 = por %p37, %p38
    %p41 = scmp.ne.s32.totalorder %s24, %s40
    %p42 = scmp.eq.s32.totalorder %s16, 0
    %p43 = por %p41, %p42
    %s45 = sadd.s32 %s44, 1
    %p48 = scmp.eq.s32.totalorder %s10, 1
    %p49 = scmp.ne.s32.totalorder %s44, %s46
    %p50 = scmp.eq.s32.totalorder %s10, 0
    %p51 = por %p49, %p50
    %p52 = scmp.ne.s32.totalorder %s44, %s46
    %p53 = scmp.eq.s32.totalorder %s15, 1
    %p54 = por %p52, %p53
    %p55 = scmp.ne.s32.totalorder %s46, %s47
    %p56 = scmp.eq.s32.totalorder %s15, 0
    %p57 = por %p55, %p56
    %p58 = scmp.ne.s32.totalorder %s46, %s47
    %p59 = scmp.eq.s32.totalorder %s16, 1
    %p60 = por %p58, %p59
    %p62 = scmp.ne.s32.totalorder %s47, %s61
    %p63 = scmp.eq.s32.totalorder %s16, 0
    %p64 = por %p62, %p63
    %s66 = sadd.s32 %s65, 1
    %p69 = scmp.eq.s32.totalorder %s10, 1
    %p70 = scmp.ne.s32.totalorder %s65, %s67
    %p71 = scmp.eq.s32.totalorder %s10, 0
    %p72 = por %p70, %p71
    %p73 = scmp.ne.s32.totalorder %s65, %s67
    %p74 = scmp.eq.s32.totalorder %s15, 1
    %p75 = por %p73, %p74
    %p76 = scmp.ne.s32.totalorder %s67, %s68
    %p77 = scmp.eq.s32.totalorder %s15, 0
    %p78 = por %p76, %p77
    %p79 = scmp.ne.s32.totalorder %s67, %s68
    %p80 = scmp.eq.s32.totalorder %s16, 1
    %p81 = por %p79, %p80
    %p83 = scmp.ne.s32.totalorder %s68, %s82
    %p84 = scmp.eq.s32.totalorder %s16, 0
    %p85 = por %p83, %p84
    %s87 = sadd.s32 %s86, 1
    %p90 = scmp.eq.s32.totalorder %s10, 1
    %p91 = scmp.ne.s32.totalorder %s86, %s88
    %p92 = scmp.eq.s32.totalorder %s10, 0
    %p93 = por %p91, %p92
    %p94 = scmp.ne.s32.totalorder %s86, %s88
    %p95 = scmp.eq.s32.totalorder %s15, 1
    %p96 = por %p94, %p95
    %p97 = scmp.ne.s32.totalorder %s88, %s89
    %p98 = scmp.eq.s32.totalorder %s15, 0
    %p99 = por %p97, %p98
    %p100 = scmp.ne.s32.totalorder %s88, %s89
    %p101 = scmp.eq.s32.totalorder %s16, 1
    %p102 = por %p100, %p101
    %p104 = scmp.ne.s32.totalorder %s89, %s103
    %p105 = scmp.eq.s32.totalorder %s16, 0
    %p106 = por %p104, %p105
    %s107 = ssub.s32 %s10, %s17
    %p108 = scmp.eq.s32.totalorder %s107, 0
    %s110 = sadd.s32 %s109, 1
    %s111 = scalar_select %p108, %s109, %s110
    %p114 = pneg %p108
    %p115 = scmp.eq.s32.totalorder %s10, 1
    %p116 = por %p114, %p115
    %p117 = scmp.ne.s32.totalorder %s109, %s112
    %p118 = scmp.eq.s32.totalorder %s10, 0
    %p119 = por %p117, %p118
    %p120 = scmp.ne.s32.totalorder %s109, %s112
    %p121 = scmp.eq.s32.totalorder %s15, 1
    %p122 = por %p120, %p121
    %p123 = scmp.ne.s32.totalorder %s112, %s113
    %p124 = scmp.eq.s32.totalorder %s15, 0
    %p125 = por %p123, %p124
    %p126 = scmp.ne.s32.totalorder %s112, %s113
    %p127 = scmp.eq.s32.totalorder %s16, 1
    %p128 = por %p126, %p127
    %p130 = scmp.ne.s32.totalorder %s113, %s129
    %p131 = scmp.eq.s32.totalorder %s16, 0
    %p132 = por %p130, %p131
    %p133 = scmp.le.s32.totalorder 1, %s10
    %p134 = scmp.lt.s32.totalorder %s10, 3
    %p135 = pnand %p133, %p134
    %p136 = pneg %p135
    // Predicated region
    $region9: #{resblock_forward.1} parent=5 // pred_check
      _
    $region10: #{resblock_forward.1} parent=5 // pred_check_branch
      %138 = sbr.rel (%p135) target = $region12
    $region11: #{resblock_forward.1} parent=5 // pred_region
      %s139 = ssub.s32 %s10, 1
      // Predicated region
      $region13: #{resblock_forward.1} parent=11 // pred_check
        %p140 = pneg %p57
      $region14: #{resblock_forward.1} parent=11 // pred_check_branch
        %142 = sbr.rel (%p140) target = $region16
      $region15: #{resblock_forward.1} parent=11 // pred_region
        _
      $region16: #{resblock_forward.1} parent=11 // pred_fallthru
        _
      // Predicated region
      $region17: #{resblock_forward.1} parent=11 // pred_check
        %p143 = pneg %p78
      $region18: #{resblock_forward.1} parent=11 // pred_check_branch
        %145 = sbr.rel (%p143) target = $region20
      $region19: #{resblock_forward.1} parent=11 // pred_region
        _
      $region20: #{resblock_forward.1} parent=11 // pred_fallthru
        _
      // Predicated region
      $region21: #{resblock_forward.1} parent=11 // pred_check
        %p146 = pneg %p99
      $region22: #{resblock_forward.1} parent=11 // pred_check_branch
        %148 = sbr.rel (%p146) target = $region24
      $region23: #{resblock_forward.1} parent=11 // pred_region
        _
      $region24: #{resblock_forward.1} parent=11 // pred_fallthru
        _
    $region12: #{resblock_forward.1} parent=5 // pred_fallthru
      _
    %p149 = scmp.lt.s32.totalorder %s10, 2
    // Predicated region
    $region25: #{resblock_forward.1} parent=5 // pred_check
      %p150 = pneg %p149
    $region26: #{resblock_forward.1} parent=5 // pred_check_branch
      %152 = sbr.rel (%p150) target = $region28
    $region27: #{resblock_forward.1} parent=5 // pred_region
      // Predicated region
      $region29: #{resblock_forward.1} parent=27 // pred_check
        %p153 = pneg %p30
      $region30: #{resblock_forward.1} parent=27 // pred_check_branch
        %155 = sbr.rel (%p153) target = $region32
      $region31: #{resblock_forward.1} parent=27 // pred_region
        %p156 = scmp.lt.s32.totalorder %s10, 1
        %s157 = scalar_select %p156, %s10, 1
        %s158 = smul.addr %s157, 2
        %s159 = smul.addr %s158, 4
        %s160 = scalar_lea.vmem %s0, %s159
      $region32: #{resblock_forward.1} parent=27 // pred_fallthru
        _
    $region28: #{resblock_forward.1} parent=5 // pred_fallthru
      _
    %p161 = scmp.le.s32.totalorder 1, %s10
    %p162 = scmp.lt.s32.totalorder %s10, 3
    %p163 = pnand %p161, %p162
    %p164 = pneg %p163
    // Predicated region
    $region33: #{resblock_forward.1} parent=5 // pred_check
      _
    $region34: #{resblock_forward.1} parent=5 // pred_check_branch
      %166 = sbr.rel (%p163) target = $region36
    $region35: #{resblock_forward.1} parent=5 // pred_region
      %s167 = ssub.s32 %s10, 1
      %p168 = scmp.lt.s32.totalorder %s15, 1
      %s169 = scalar_select %p168, %s15, 1
      %s170 = smul.addr %s169, 2
      %s171 = smul.addr %s170, 4
      %s172 = scalar_lea.vmem %s0, %s171
      %p173 = pneg %p36
      %p174 = pneg %p33
      %p175 = pneg %p57
      %p176 = pneg %p54
      %p177 = pneg %p78
      %p178 = pneg %p75
      %p179 = pneg %p99
      %p180 = pneg %p96
      %p181 = pneg %p125
      %p182 = pneg %p122
      %p183 = scmp.lt.s32.totalorder %s15, 1
      %s184 = scalar_select %p183, %s15, 1
      %s185 = smul.addr %s184, 2
      %s186 = smul.addr %s185, 4
      %s187 = scalar_lea.vmem %s4, %s186
      %p188 = scmp.lt.s32.totalorder %s15, 1
      %s189 = scalar_select %p188, %s15, 1
      %s190 = smul.addr %s189, 2
      %s191 = smul.addr %s190, 4
      %s192 = scalar_lea.vmem %s0, %s191
      %p193 = scmp.lt.s32.totalorder %s15, 1
      %s194 = scalar_select %p193, %s15, 1
      %s195 = smul.addr %s194, 2
      %s196 = smul.addr %s195, 4
      %s197 = scalar_lea.vmem %s4, %s196
      %199 = vst [vmem:[#allocation2] sm:$0xff] 0
      %200 = vst [vmem:[#allocation2 + $0x18] sm:$0xff] 0
      %201 = vst [vmem:[#allocation3] sm:$0xff] 0
      %202 = vst [vmem:[#allocation3 + $0x18] sm:$0xff] 0
      %v203 = vld [vmem:[%s1] sm:$0x3]
      %v204 = vld [vmem:[%s192] sm:$0xff]
      %v206 = vcombine.high %v204, %v204
      %v208 = vpack.c.bf16 %v204, %v204
      %v209 = vpack.c.bf16 %v206, %v206
      %vm210 = vcmask 1041408
      %v213 = vsel %vm210, %v208, 0
      %v216 = vsel %vm210, %v209, 0
      %218 = vst [vmem:[#allocation2 + $0x8] sm:$0xff] %v213
      %219 = vst [vmem:[#allocation2 + $0x10] sm:$0xff] %v216
      %v220 = vld [vmem:[#allocation2] sm:$0xff]
      %v221 = vld [vmem:[#allocation2 + $0x8] sm:$0xff]
      %v222 = vld [vmem:[#allocation2 + $0x10] sm:$0xff]
      %v225 = vunpack.c.l.s4 1966171168
      %v226 = vunpack.c.0.s8 %v225
      %v227 = vlaneseq
      %v228 = vshrl.u32 %v227, 7
      %v229 = vsub.s32 %v226, %v228
      %v230 = vrot.slane %v203, %v229
      %v231 = vcombine.high %v230, %v230
      %v233 = vunpack.c.l.s4 1966171168
      %v234 = vunpack.c.0.s8 %v233
      %v235 = vlaneseq
      %v236 = vshrl.u32 %v235, 7
      %v237 = vsub.s32 %v234, %v236
      %v238 = vrot.slane %v230, %v237
      %v240 = vunpack.c.l.s4 1966171168
      %v241 = vunpack.c.0.s8 %v240
      %v242 = vlaneseq
      %v243 = vshrl.u32 %v242, 7
      %v244 = vsub.s32 %v241, %v243
      %v245 = vrot.slane %v231, %v244
      %v247 = vpack.i.b16 %v238, %v238
      %v249 = vlaneseq
      %v250 = vshrl.u32 %v249, 7
      %v251 = vsub.s32 0, %v250
      %v252 = vrot.slane %v247, %v251
      %v254 = vpack.i.b16 %v245, %v245
      %v256 = vlaneseq
      %v257 = vshrl.u32 %v256, 7
      %v258 = vsub.s32 0, %v257
      %v259 = vrot.slane %v254, %v258
      %262 = vrot.lane.b32.xlu0 %v252, 111
      %v263 = vpop.permute.xlu0 %262
      %264 = vrot.lane.b32.xlu0 %v259, 111
      %v265 = vpop.permute.xlu0 %264
      %vm266 = vcmask 908288
      %v267 = vsel %vm266, %v263, %v265
      %v271 = vmul.bf16 %v220, %v263
      %v272 = vmul.bf16 %v221, %v267
      %v273 = vmul.bf16 %v222, %v265
      %277 = vrot.lane.b32.xlu0 %v271, 17
      %v278 = vpop.permute.xlu0 %277
      %279 = vrot.lane.b32.xlu0 %v272, 17
      %v280 = vpop.permute.xlu0 %279
      %281 = vrot.lane.b32.xlu0 %v273, 17
      %v282 = vpop.permute.xlu0 %281
      %vm283 = vcmask 138240
      %v284 = vsel %vm283, %v278, %v280
      %v285 = vsel %vm283, %v280, %v282
      %288 = vst [vmem:[#allocation4] sm:$0xff] %v284
      %289 = vst [vmem:[#allocation4 + $0x8] sm:$0xff] %v285
      %v290 = vld [vmem:[#allocation2] sm:$0xff]
      %v291 = vld [vmem:[#allocation2 + $0x8] sm:$0xff]
      %v292 = vld [vmem:[#allocation2 + $0x10] sm:$0xff]
      %296 = vrot.lane.b32.xlu0 %v290, 16
      %v297 = vpop.permute.xlu0 %296
      %298 = vrot.lane.b32.xlu0 %v291, 16
      %v299 = vpop.permute.xlu0 %298
      %300 = vrot.lane.b32.xlu0 %v292, 16
      %v301 = vpop.permute.xlu0 %300
      %vm302 = vcmask 130048
      %v303 = vsel %vm302, %v297, %v299
      %v304 = vsel %vm302, %v299, %v301
      %307 = vst [vmem:[#allocation4 + $0x10] sm:$0xff] %v303
      %308 = vst [vmem:[#allocation4 + $0x18] sm:$0xff] %v304
      %v309 = vld [vmem:[#allocation2] sm:$0xff]
      %v310 = vld [vmem:[#allocation2 + $0x8] sm:$0xff]
      %v311 = vld [vmem:[#allocation2 + $0x10] sm:$0xff]
      %v312 = vshrl.u32 %v238, 16
      %v313 = vpack.i.b16 %v312, %v312
      %v315 = vlaneseq
      %v316 = vshrl.u32 %v315, 7
      %v317 = vsub.s32 0, %v316
      %v318 = vrot.slane %v313, %v317
      %v319 = vshrl.u32 %v245, 16
      %v320 = vpack.i.b16 %v319, %v319
      %v322 = vlaneseq
      %v323 = vshrl.u32 %v322, 7
      %v324 = vsub.s32 0, %v323
      %v325 = vrot.slane %v320, %v324
      %328 = vrot.lane.b32.xlu0 %v318, 113
      %v329 = vpop.permute.xlu0 %328
      %330 = vrot.lane.b32.xlu0 %v325, 113
      %v331 = vpop.permute.xlu0 %330
      %vm332 = vcmask 924672
      %v333 = vsel %vm332, %v329, %v331
      %v337 = vmul.bf16 %v309, %v329
      %v338 = vmul.bf16 %v310, %v333
      %v339 = vmul.bf16 %v311, %v331
      %343 = vrot.lane.b32.xlu0 %v337, 15
      %v344 = vpop.permute.xlu0 %343
      %345 = vrot.lane.b32.xlu0 %v338, 15
      %v346 = vpop.permute.xlu0 %345
      %347 = vrot.lane.b32.xlu0 %v339, 15
      %v348 = vpop.permute.xlu0 %347
      %vm349 = vcmask 121856
      %v350 = vsel %vm349, %v344, %v346
      %v351 = vsel %vm349, %v346, %v348
      %354 = vst [vmem:[#allocation4 + $0x20] sm:$0xff] %v350
      %355 = vst [vmem:[#allocation4 + $0x28] sm:$0xff] %v351
      %v356 = vld [vmem:[#allocation2] sm:$0xff]
      %v357 = vld [vmem:[#allocation2 + $0x8] sm:$0xff]
      %v358 = vld [vmem:[#allocation2 + $0x10] sm:$0xff]
      %359 = vrot.lane.b32.xlu0 %v252, 127
      %v360 = vpop.permute.xlu0 %359
      %361 = vrot.lane.b32.xlu0 %v259, 127
      %v362 = vpop.permute.xlu0 %361
      %vm363 = vcmask 1039360
      %v364 = vsel %vm363, %v360, %v362
      %v368 = vmul.bf16 %v356, %v360
      %v369 = vmul.bf16 %v357, %v364
      %v370 = vmul.bf16 %v358, %v362
      %374 = vrot.lane.b32.xlu0 %v368, 1
      %v375 = vpop.permute.xlu0 %374
      %376 = vrot.lane.b32.xlu0 %v369, 1
      %v377 = vpop.permute.xlu0 %376
      %378 = vrot.lane.b32.xlu0 %v370, 1
      %v379 = vpop.permute.xlu0 %378
      %vm380 = vcmask 7168
      %v381 = vsel %vm380, %v375, %v377
      %v382 = vsel %vm380, %v377, %v379
      %385 = vst [vmem:[#allocation4 + $0x30] sm:$0xff] %v381
      %386 = vst [vmem:[#allocation4 + $0x38] sm:$0xff] %v382
      %v387 = vld [vmem:[#allocation2 + $0x8] sm:$0xff]
      %v388 = vld [vmem:[#allocation2 + $0x10] sm:$0xff]
      %389 = vst [vmem:[#allocation4 + $0x40] sm:$0xff] %v387
      %390 = vst [vmem:[#allocation4 + $0x48] sm:$0xff] %v388
      %v391 = vld [vmem:[#allocation2 + $0x8] sm:$0xff]
      %v392 = vld [vmem:[#allocation2 + $0x10] sm:$0xff]
      %v393 = vld [vmem:[#allocation2 + $0x18] sm:$0xff]
      %394 = vrot.lane.b32.xlu0 %v318, 1
      %v395 = vpop.permute.xlu0 %394
      %396 = vrot.lane.b32.xlu0 %v325, 1
      %v397 = vpop.permute.xlu0 %396
      %v398 = vsel %vm380, %v395, %v397
      %v402 = vmul.bf16 %v391, %v395
      %v403 = vmul.bf16 %v392, %v398
      %v404 = vmul.bf16 %v393, %v397
      %408 = vrot.lane.b32.xlu0 %v402, 127
      %v409 = vpop.permute.xlu0 %408
      %410 = vrot.lane.b32.xlu0 %v403, 127
      %v411 = vpop.permute.xlu0 %410
      %412 = vrot.lane.b32.xlu0 %v404, 127
      %v413 = vpop.permute.xlu0 %412
      %v414 = vsel %vm363, %v409, %v411
      %v415 = vsel %vm363, %v411, %v413
      %418 = vst [vmem:[#allocation4 + $0x50] sm:$0xff] %v414
      %419 = vst [vmem:[#allocation4 + $0x58] sm:$0xff] %v415
      %v420 = vld [vmem:[#allocation2 + $0x8] sm:$0xff]
      %v421 = vld [vmem:[#allocation2 + $0x10] sm:$0xff]
      %v422 = vld [vmem:[#allocation2 + $0x18] sm:$0xff]
      %423 = vrot.lane.b32.xlu0 %v252, 15
      %v424 = vpop.permute.xlu0 %423
      %425 = vrot.lane.b32.xlu0 %v259, 15
      %v426 = vpop.permute.xlu0 %425
      %v427 = vsel %vm349, %v424, %v426
      %v431 = vmul.bf16 %v420, %v424
      %v432 = vmul.bf16 %v421, %v427
      %v433 = vmul.bf16 %v422, %v426
      %437 = vrot.lane.b32.xlu0 %v431, 113
      %v438 = vpop.permute.xlu0 %437
      %439 = vrot.lane.b32.xlu0 %v432, 113
      %v440 = vpop.permute.xlu0 %439
      %441 = vrot.lane.b32.xlu0 %v433, 113
      %v442 = vpop.permute.xlu0 %441
      %v443 = vsel %vm332, %v438, %v440
      %v444 = vsel %vm332, %v440, %v442
      %447 = vst [vmem:[#allocation4 + $0x60] sm:$0xff] %v443
      %448 = vst [vmem:[#allocation4 + $0x68] sm:$0xff] %v444
      %v449 = vld [vmem:[#allocation2 + $0x8] sm:$0xff]
      %v450 = vld [vmem:[#allocation2 + $0x10] sm:$0xff]
      %v451 = vld [vmem:[#allocation2 + $0x18] sm:$0xff]
      %455 = vrot.lane.b32.xlu0 %v449, 112
      %v456 = vpop.permute.xlu0 %455
      %457 = vrot.lane.b32.xlu0 %v450, 112
      %v458 = vpop.permute.xlu0 %457
      %459 = vrot.lane.b32.xlu0 %v451, 112
      %v460 = vpop.permute.xlu0 %459
      %vm461 = vcmask 916480
      %v462 = vsel %vm461, %v456, %v458
      %v463 = vsel %vm461, %v458, %v460
      %466 = vst [vmem:[#allocation4 + $0x70] sm:$0xff] %v462
      %467 = vst [vmem:[#allocation4 + $0x78] sm:$0xff] %v463
      %v468 = vld [vmem:[#allocation2 + $0x8] sm:$0xff]
      %v469 = vld [vmem:[#allocation2 + $0x10] sm:$0xff]
      %v470 = vld [vmem:[#allocation2 + $0x18] sm:$0xff]
      %471 = vrot.lane.b32.xlu0 %v318, 17
      %v472 = vpop.permute.xlu0 %471
      %473 = vrot.lane.b32.xlu0 %v325, 17
      %v474 = vpop.permute.xlu0 %473
      %v475 = vsel %vm283, %v472, %v474
      %v479 = vmul.bf16 %v468, %v472
      %v480 = vmul.bf16 %v469, %v475
      %v481 = vmul.bf16 %v470, %v474
      %485 = vrot.lane.b32.xlu0 %v479, 111
      %v486 = vpop.permute.xlu0 %485
      %487 = vrot.lane.b32.xlu0 %v480, 111
      %v488 = vpop.permute.xlu0 %487
      %489 = vrot.lane.b32.xlu0 %v481, 111
      %v490 = vpop.permute.xlu0 %489
      %v491 = vsel %vm266, %v486, %v488
      %v492 = vsel %vm266, %v488, %v490
      %495 = vst [vmem:[#allocation4 + $0x80] sm:$0xff] %v491
      %496 = vst [vmem:[#allocation4 + $0x88] sm:$0xff] %v492
      %v497 = vld [vmem:[%s2] sm:$0xf]
      %v498 = vld [vmem:[#allocation4] sm:$0xff]
      %v499 = vld [vmem:[#allocation4 + $0x8] sm:$0xff]
      %v500 = vld [vmem:[#allocation4 + $0x10] sm:$0xff]
      %v501 = vld [vmem:[#allocation4 + $0x18] sm:$0xff]
      %v502 = vld [vmem:[#allocation4 + $0x20] sm:$0xff]
      %v503 = vld [vmem:[#allocation4 + $0x28] sm:$0xff]
      %v504 = vld [vmem:[#allocation4 + $0x30] sm:$0xff]
      %v505 = vld [vmem:[#allocation4 + $0x38] sm:$0xff]
      %v506 = vld [vmem:[#allocation4 + $0x40] sm:$0xff]
      %v507 = vld [vmem:[#allocation4 + $0x48] sm:$0xff]
      %v508 = vld [vmem:[#allocation4 + $0x50] sm:$0xff]
      %v509 = vld [vmem:[#allocation4 + $0x58] sm:$0xff]
      %v510 = vld [vmem:[#allocation4 + $0x60] sm:$0xff]
      %v511 = vld [vmem:[#allocation4 + $0x68] sm:$0xff]
      %v512 = vld [vmem:[#allocation4 + $0x70] sm:$0xff]
      %v513 = vld [vmem:[#allocation4 + $0x78] sm:$0xff]
      %v514 = vld [vmem:[#allocation4 + $0x80] sm:$0xff]
      %v515 = vld [vmem:[#allocation4 + $0x88] sm:$0xff]
      %v518 = vunpack.c.l.s4 1983009808
      %v519 = vunpack.c.0.s8 %v518
      %v520 = vlaneseq
      %v521 = vshrl.u32 %v520, 7
      %v522 = vsub.s32 %v519, %v521
      %v523 = vrot.slane %v497, %v522
      %v524 = vcombine.high %v523, %v523
      %vm526 = vcmask 130048
      %v528 = vsel %vm526, %v524, 0
      %530 = vmatprep.subr.bf16.mxu0 %v499
      %531 = vmatpush1.bf16.msra.mxu0 %v498
      %532 = vmatprep.subr.bf16.mxu0 %v501
      %533 = vmatpush1.bf16.msra.mxu0 %v500
      %534 = vmatprep.subr.bf16.mxu0 %v503
      %535 = vmatpush1.bf16.msra.mxu0 %v502
      %536 = vmatprep.subr.bf16.mxu0 %v505
      %537 = vmatpush1.bf16.msra.mxu0 %v504
      %538 = vmatprep.subr.bf16.mxu0 %v507
      %539 = vmatpush1.bf16.msra.mxu0 %v506
      %540 = vmatprep.subr.bf16.mxu0 %v509
      %541 = vmatpush1.bf16.msra.mxu0 %v508
      %542 = vmatprep.subr.bf16.mxu0 %v511
      %543 = vmatpush1.bf16.msra.mxu0 %v510
      %544 = vmatprep.subr.bf16.mxu0 %v513
      %545 = vmatpush1.bf16.msra.mxu0 %v512
      %546 = vmatprep.subr.bf16.mxu0 %v515
      %547 = vmatpush1.bf16.msra.mxu0 %v514
      %548 = vmatprep.subr.bf16.mxu0 0
      %549 = vmatpush1.bf16.msra.mxu0 0
      %550 = vmatprep.subr.bf16.mxu0 0
      %551 = vmatpush1.bf16.msra.mxu0 0
      %552 = vmatprep.subr.bf16.mxu0 0
      %553 = vmatpush1.bf16.msra.mxu0 0
      %554 = vmatprep.subr.bf16.mxu0 0
      %555 = vmatpush1.bf16.msra.mxu0 0
      %556 = vmatprep.subr.bf16.mxu0 0
      %557 = vmatpush1.bf16.msra.mxu0 0
      %558 = vmatprep.subr.bf16.mxu0 0
      %559 = vmatpush1.bf16.msra.mxu0 0
      %560 = vmatprep.subr.bf16.mxu0 0
      %561 = vmatpush1.bf16.msra.mxu0 0
      %562 = vmatprep.mubr.bf16.mxu0 %v528
      %563 = vmatmul.mubr.bf16.gmra.mrb[0].mxu0 %v523
      %v564 = vpop.f32.mrb[0].mxu0
      %v565 = vadd.f32 0.0, %v564
      %v566 = vpop.f32.mrb[0].mxu0
      %v567 = vadd.f32 0.0, %v566
      %v568 = vpop.f32.mrb[0].mxu0
      %v569 = vpop.f32.mrb[0].mxu0
      %570 = vdwg.mxu0
      %vm571 = vcmp.gt.f32.partialorder %v565, 0.0
      %vm572 = vcmp.gt.f32.partialorder %v567, 0.0
      %v573 = vmul.f32 %v565, 0.01
      %v574 = vmul.f32 %v567, 0.01
      %v575 = vsel %vm571, %v565, %v573
      %v576 = vsel %vm572, %v567, %v574
      %v577 = vpack.c.bf16 %v575, %v575
      %v578 = vpack.c.bf16 %v576, %v576
      %v580 = vsel %vm210, %v577, 0
      %v583 = vsel %vm210, %v578, 0
      %585 = vst [vmem:[#allocation3 + $0x8] sm:$0xff] %v580
      %586 = vst [vmem:[#allocation3 + $0x10] sm:$0xff] %v583
      %v587 = vld [vmem:[#allocation3] sm:$0xff]
      %v588 = vld [vmem:[#allocation3 + $0x8] sm:$0xff]
      %v589 = vld [vmem:[#allocation3 + $0x10] sm:$0xff]
      %v590 = vmul.bf16 %v587, %v263
      %v591 = vmul.bf16 %v588, %v267
      %v592 = vmul.bf16 %v589, %v265
      %596 = vrot.lane.b32.xlu0 %v590, 17
      %v597 = vpop.permute.xlu0 %596
      %598 = vrot.lane.b32.xlu0 %v591, 17
      %v599 = vpop.permute.xlu0 %598
      %600 = vrot.lane.b32.xlu0 %v592, 17
      %v601 = vpop.permute.xlu0 %600
      %v602 = vsel %vm283, %v597, %v599
      %v603 = vsel %vm283, %v599, %v601
      %606 = vst [vmem:[#allocation4] sm:$0xff] %v602
      %607 = vst [vmem:[#allocation4 + $0x8] sm:$0xff] %v603
      %v608 = vld [vmem:[#allocation3] sm:$0xff]
      %v609 = vld [vmem:[#allocation3 + $0x8] sm:$0xff]
      %v610 = vld [vmem:[#allocation3 + $0x10] sm:$0xff]
      %614 = vrot.lane.b32.xlu0 %v608, 16
      %v615 = vpop.permute.xlu0 %614
      %616 = vrot.lane.b32.xlu0 %v609, 16
      %v617 = vpop.permute.xlu0 %616
      %618 = vrot.lane.b32.xlu0 %v610, 16
      %v619 = vpop.permute.xlu0 %618
      %v620 = vsel %vm302, %v615, %v617
      %v621 = vsel %vm302, %v617, %v619
      %624 = vst [vmem:[#allocation4 + $0x10] sm:$0xff] %v620
      %625 = vst [vmem:[#allocation4 + $0x18] sm:$0xff] %v621
      %v626 = vld [vmem:[#allocation3] sm:$0xff]
      %v627 = vld [vmem:[#allocation3 + $0x8] sm:$0xff]
      %v628 = vld [vmem:[#allocation3 + $0x10] sm:$0xff]
      %v629 = vmul.bf16 %v626, %v329
      %v630 = vmul.bf16 %v627, %v333
      %v631 = vmul.bf16 %v628, %v331
      %635 = vrot.lane.b32.xlu0 %v629, 15
      %v636 = vpop.permute.xlu0 %635
      %637 = vrot.lane.b32.xlu0 %v630, 15
      %v638 = vpop.permute.xlu0 %637
      %639 = vrot.lane.b32.xlu0 %v631, 15
      %v640 = vpop.permute.xlu0 %639
      %v641 = vsel %vm349, %v636, %v638
      %v642 = vsel %vm349, %v638, %v640
      %645 = vst [vmem:[#allocation4 + $0x20] sm:$0xff] %v641
      %646 = vst [vmem:[#allocation4 + $0x28] sm:$0xff] %v642
      %v647 = vld [vmem:[#allocation3] sm:$0xff]
      %v648 = vld [vmem:[#allocation3 + $0x8] sm:$0xff]
      %v649 = vld [vmem:[#allocation3 + $0x10] sm:$0xff]
      %v650 = vmul.bf16 %v647, %v360
      %v651 = vmul.bf16 %v648, %v364
      %v652 = vmul.bf16 %v649, %v362
      %656 = vrot.lane.b32.xlu0 %v650, 1
      %v657 = vpop.permute.xlu0 %656
      %658 = vrot.lane.b32.xlu0 %v651, 1
      %v659 = vpop.permute.xlu0 %658
      %660 = vrot.lane.b32.xlu0 %v652, 1
      %v661 = vpop.permute.xlu0 %660
      %v662 = vsel %vm380, %v657, %v659
      %v663 = vsel %vm380, %v659, %v661
      %666 = vst [vmem:[#allocation4 + $0x30] sm:$0xff] %v662
      %667 = vst [vmem:[#allocation4 + $0x38] sm:$0xff] %v663
      %v668 = vld [vmem:[#allocation3 + $0x8] sm:$0xff]
      %v669 = vld [vmem:[#allocation3 + $0x10] sm:$0xff]
      %670 = vst [vmem:[#allocation4 + $0x40] sm:$0xff] %v668
      %671 = vst [vmem:[#allocation4 + $0x48] sm:$0xff] %v669
      %v672 = vld [vmem:[#allocation3 + $0x8] sm:$0xff]
      %v673 = vld [vmem:[#allocation3 + $0x10] sm:$0xff]
      %v674 = vld [vmem:[#allocation3 + $0x18] sm:$0xff]
      %v675 = vmul.bf16 %v672, %v395
      %v676 = vmul.bf16 %v673, %v398
      %v677 = vmul.bf16 %v674, %v397
      %681 = vrot.lane.b32.xlu0 %v675, 127
      %v682 = vpop.permute.xlu0 %681
      %683 = vrot.lane.b32.xlu0 %v676, 127
      %v684 = vpop.permute.xlu0 %683
      %685 = vrot.lane.b32.xlu0 %v677, 127
      %v686 = vpop.permute.xlu0 %685
      %v687 = vsel %vm363, %v682, %v684
      %v688 = vsel %vm363, %v684, %v686
      %691 = vst [vmem:[#allocation4 + $0x50] sm:$0xff] %v687
      %692 = vst [vmem:[#allocation4 + $0x58] sm:$0xff] %v688
      %v693 = vld [vmem:[#allocation3 + $0x8] sm:$0xff]
      %v694 = vld [vmem:[#allocation3 + $0x10] sm:$0xff]
      %v695 = vld [vmem:[#allocation3 + $0x18] sm:$0xff]
      %v696 = vmul.bf16 %v693, %v424
      %v697 = vmul.bf16 %v694, %v427
      %v698 = vmul.bf16 %v695, %v426
      %702 = vrot.lane.b32.xlu0 %v696, 113
      %v703 = vpop.permute.xlu0 %702
      %704 = vrot.lane.b32.xlu0 %v697, 113
      %v705 = vpop.permute.xlu0 %704
      %706 = vrot.lane.b32.xlu0 %v698, 113
      %v707 = vpop.permute.xlu0 %706
      %v708 = vsel %vm332, %v703, %v705
      %v709 = vsel %vm332, %v705, %v707
      %712 = vst [vmem:[#allocation4 + $0x60] sm:$0xff] %v708
      %713 = vst [vmem:[#allocation4 + $0x68] sm:$0xff] %v709
      %v714 = vld [vmem:[#allocation3 + $0x8] sm:$0xff]
      %v715 = vld [vmem:[#allocation3 + $0x10] sm:$0xff]
      %v716 = vld [vmem:[#allocation3 + $0x18] sm:$0xff]
      %720 = vrot.lane.b32.xlu0 %v714, 112
      %v721 = vpop.permute.xlu0 %720
      %722 = vrot.lane.b32.xlu0 %v715, 112
      %v723 = vpop.permute.xlu0 %722
      %724 = vrot.lane.b32.xlu0 %v716, 112
      %v725 = vpop.permute.xlu0 %724
      %v726 = vsel %vm461, %v721, %v723
      %v727 = vsel %vm461, %v723, %v725
      %730 = vst [vmem:[#allocation4 + $0x70] sm:$0xff] %v726
      %731 = vst [vmem:[#allocation4 + $0x78] sm:$0xff] %v727
      %v732 = vld [vmem:[#allocation3 + $0x8] sm:$0xff]
      %v733 = vld [vmem:[#allocation3 + $0x10] sm:$0xff]
      %v734 = vld [vmem:[#allocation3 + $0x18] sm:$0xff]
      %v735 = vmul.bf16 %v732, %v472
      %v736 = vmul.bf16 %v733, %v475
      %v737 = vmul.bf16 %v734, %v474
      %741 = vrot.lane.b32.xlu0 %v735, 111
      %v742 = vpop.permute.xlu0 %741
      %743 = vrot.lane.b32.xlu0 %v736, 111
      %v744 = vpop.permute.xlu0 %743
      %745 = vrot.lane.b32.xlu0 %v737, 111
      %v746 = vpop.permute.xlu0 %745
      %v747 = vsel %vm266, %v742, %v744
      %v748 = vsel %vm266, %v744, %v746
      %751 = vst [vmem:[#allocation4 + $0x80] sm:$0xff] %v747
      %752 = vst [vmem:[#allocation4 + $0x88] sm:$0xff] %v748
      %v753 = vld [vmem:[%s3] sm:$0xf]
      %v754 = vld [vmem:[#allocation4] sm:$0xff]
      %v755 = vld [vmem:[#allocation4 + $0x8] sm:$0xff]
      %v756 = vld [vmem:[#allocation4 + $0x10] sm:$0xff]
      %v757 = vld [vmem:[#allocation4 + $0x18] sm:$0xff]
      %v758 = vld [vmem:[#allocation4 + $0x20] sm:$0xff]
      %v759 = vld [vmem:[#allocation4 + $0x28] sm:$0xff]
      %v760 = vld [vmem:[#allocation4 + $0x30] sm:$0xff]
      %v761 = vld [vmem:[#allocation4 + $0x38] sm:$0xff]
      %v762 = vld [vmem:[#allocation4 + $0x40] sm:$0xff]
      %v763 = vld [vmem:[#allocation4 + $0x48] sm:$0xff]
      %v764 = vld [vmem:[#allocation4 + $0x50] sm:$0xff]
      %v765 = vld [vmem:[#allocation4 + $0x58] sm:$0xff]
      %v766 = vld [vmem:[#allocation4 + $0x60] sm:$0xff]
      %v767 = vld [vmem:[#allocation4 + $0x68] sm:$0xff]
      %v768 = vld [vmem:[#allocation4 + $0x70] sm:$0xff]
      %v769 = vld [vmem:[#allocation4 + $0x78] sm:$0xff]
      %v770 = vld [vmem:[#allocation4 + $0x80] sm:$0xff]
      %v771 = vld [vmem:[#allocation4 + $0x88] sm:$0xff]
      %v772 = vld [vmem:[%s192] sm:$0xff]
      %v775 = vunpack.c.l.s4 1983009808
      %v776 = vunpack.c.0.s8 %v775
      %v777 = vlaneseq
      %v778 = vshrl.u32 %v777, 7
      %v779 = vsub.s32 %v776, %v778
      %v780 = vrot.slane %v753, %v779
      %v781 = vcombine.high %v780, %v780
      %v784 = vcombine.high %v772, %v772
      %v787 = vsel %vm526, %v781, 0
      %789 = vmatprep.subr.bf16.mxu0 %v755
      %790 = vmatpush1.bf16.msra.mxu0 %v754
      %791 = vmatprep.subr.bf16.mxu0 %v757
      %792 = vmatpush1.bf16.msra.mxu0 %v756
      %793 = vmatprep.subr.bf16.mxu0 %v759
      %794 = vmatpush1.bf16.msra.mxu0 %v758
      %795 = vmatprep.subr.bf16.mxu0 %v761
      %796 = vmatpush1.bf16.msra.mxu0 %v760
      %797 = vmatprep.subr.bf16.mxu0 %v763
      %798 = vmatpush1.bf16.msra.mxu0 %v762
      %799 = vmatprep.subr.bf16.mxu0 %v765
      %800 = vmatpush1.bf16.msra.mxu0 %v764
      %801 = vmatprep.subr.bf16.mxu0 %v767
      %802 = vmatpush1.bf16.msra.mxu0 %v766
      %803 = vmatprep.subr.bf16.mxu0 %v769
      %804 = vmatpush1.bf16.msra.mxu0 %v768
      %805 = vmatprep.subr.bf16.mxu0 %v771
      %806 = vmatpush1.bf16.msra.mxu0 %v770
      %807 = vmatprep.subr.bf16.mxu0 0
      %808 = vmatpush1.bf16.msra.mxu0 0
      %809 = vmatprep.subr.bf16.mxu0 0
      %810 = vmatpush1.bf16.msra.mxu0 0
      %811 = vmatprep.subr.bf16.mxu0 0
      %812 = vmatpush1.bf16.msra.mxu0 0
      %813 = vmatprep.subr.bf16.mxu0 0
      %814 = vmatpush1.bf16.msra.mxu0 0
      %815 = vmatprep.subr.bf16.mxu0 0
      %816 = vmatpush1.bf16.msra.mxu0 0
      %817 = vmatprep.subr.bf16.mxu0 0
      %818 = vmatpush1.bf16.msra.mxu0 0
      %819 = vmatprep.subr.bf16.mxu0 0
      %820 = vmatpush1.bf16.msra.mxu0 0
      %821 = vmatprep.mubr.bf16.mxu0 %v787
      %822 = vmatmul.mubr.bf16.gmra.mrb[0].mxu0 %v780
      %v823 = vpop.f32.mrb[0].mxu0
      %v824 = vadd.f32 %v772, %v823
      %v825 = vpop.f32.mrb[0].mxu0
      %v826 = vadd.f32 %v784, %v825
      %v827 = vpop.f32.mrb[0].mxu0
      %v828 = vpop.f32.mrb[0].mxu0
      %829 = vdwg.mxu0
      %vm830 = vcmp.gt.f32.partialorder %v824, 0.0
      %vm831 = vcmp.gt.f32.partialorder %v826, 0.0
      %v832 = vmul.f32 %v824, 0.01
      %v833 = vmul.f32 %v826, 0.01
      %v834 = vsel %vm830, %v824, %v832
      %v835 = vsel %vm831, %v826, %v833
      %v838 = vcombine.low %v834, %v835
      %840 = vst [vmem:[%s197] sm:$0xff] %v838
      %p841 = scmp.lt.s32.totalorder %s15, 1
      %s842 = scalar_select %p841, %s15, 1
      %s843 = smul.addr %s842, 2
      %s844 = smul.addr %s843, 4
      %s845 = scalar_lea.vmem %s4, %s844
      // Predicated region
      $region37: #{resblock_forward.1} parent=35 // pred_check
        %p846 = pneg %p122
      $region38: #{resblock_forward.1} parent=35 // pred_check_branch
        %848 = sbr.rel (%p846) target = $region40
      $region39: #{resblock_forward.1} parent=35 // pred_region
        _
      $region40: #{resblock_forward.1} parent=35 // pred_fallthru
        _
    $region36: #{resblock_forward.1} parent=5 // pred_fallthru
      _
    %p849 = scmp.le.s32.totalorder 2, %s10
    // Predicated region
    $region41: #{resblock_forward.1} parent=5 // pred_check
      %p850 = pneg %p849
    $region42: #{resblock_forward.1} parent=5 // pred_check_branch
      %852 = sbr.rel (%p850) target = $region44
    $region43: #{resblock_forward.1} parent=5 // pred_region
      %s853 = ssub.s32 %s10, 2
      // Predicated region
      $region45: #{resblock_forward.1} parent=43 // pred_check
        %p854 = pneg %p128
      $region46: #{resblock_forward.1} parent=43 // pred_check_branch
        %856 = sbr.rel (%p854) target = $region48
      $region47: #{resblock_forward.1} parent=43 // pred_region
        %p857 = scmp.lt.s32.totalorder %s16, 1
        %s858 = scalar_select %p857, %s16, 1
        %s859 = smul.addr %s858, 2
        %s860 = smul.addr %s859, 4
        %s861 = scalar_lea.vmem %s4, %s860
      $region48: #{resblock_forward.1} parent=43 // pred_fallthru
        _
    $region44: #{resblock_forward.1} parent=5 // pred_fallthru
      _
  $region6: #{resblock_forward.1} parent=0 // loop_footer
    %s14 = sadd.s32 1, %s10
  $region7: #{resblock_forward.1} parent=0 // loop_footer_branch
    %9 = sbr.rel target = $region3
  $region8: #{resblock_forward.1} parent=0 // loop_exit
    _

</llo_original>
